<compile_context>
chip_gen: v7x
topology: tpu7x:2x2x1
jax: 0.10.0
libtpu: 0.0.40
codegen_flags: <defaults>
</compile_context>

<pallas_src>
import functools

import jax
import jax.numpy as jnp
from jax.experimental import pallas as pl
from jax.experimental.pallas import tpu as pltpu

_LANES = 128
_SMALL_INPUT_ELEMS = 1 << 16  # below this, plain fused jnp.where wins.


def _tilu_kernel(x_ref, o_ref, *, threshold):
    # x_ref / o_ref: (block_rows, 128) tiles in VMEM. Pure VPU compare+select.
    x = x_ref[...]
    o_ref[...] = jnp.where(x > threshold, x, jnp.zeros_like(x))


def _tpu_generation_params():
    """Returns (tile_bytes, vmem_limit_bytes, num_tensorcores) for this chip."""
    kind = ""
    try:
        kind = jax.devices()[0].device_kind.lower()
    except Exception:  # pragma: no cover - e.g. no devices during tracing tools
        pass
    if "7" in kind:  # v7x: 2 TCs / chip, 64 MiB physical VMEM, ~3.2 TB/s HBM
        return 8 << 20, 40 << 20, 2
    if "v6" in kind or "6e" in kind:  # v6e: 1 TC, 128 MiB VMEM
        return 8 << 20, 48 << 20, 1
    if "v5" in kind:  # v5e / v5p: 1 TC visible, 128 MiB VMEM, ~0.82 TB/s HBM
        return 4 << 20, 24 << 20, 1
    # Unknown generation: conservative defaults.
    return 4 << 20, 24 << 20, 1


def _round_up(v: int, m: int) -> int:
    return ((v + m - 1) // m) * m


def _pick_block_rows(rows: int, itemsize: int, tile_bytes: int, num_tc: int) -> int:
    """Pick a (block_rows, 128) tile: byte-budgeted, sublane-aligned, TC-aware."""
    # Sublane-packing-aware row alignment: 8 (f32), 16 (bf16), 32 (int8).
    row_align = max(8, 32 // max(1, itemsize))
    row_bytes = itemsize * _LANES
    max_rows = max(row_align, (tile_bytes // row_bytes) // row_align * row_align)

    if rows <= max_rows:
        if num_tc > 1 and rows > 4 * row_align:
            # Two balanced blocks so both v7x TensorCores stream.
            half = _round_up((rows + 1) // 2, row_align)
            return min(rows, half)
        # Single block covering the whole array (legal: equals full dims).
        return rows

    block = max_rows
    if num_tc > 1:
        # Make the grid-step count a multiple of the TC count (balanced work).
        steps = -(-rows // block)
        if steps % num_tc != 0:
            steps = _round_up(steps, num_tc)
            block = _round_up(-(-rows // steps), row_align)
    return block


def tilu_pallas(x: jax.Array, threshold,
                *, min_pallas_elems: int = _SMALL_INPUT_ELEMS) -> jax.Array:
    """Elementwise tilu(x) = x if x > threshold else 0. Shape/dtype preserved.

    `threshold` must be a static Python scalar (matches the nn.Module, which
    fixes it at construction).
    """
    orig_shape = x.shape
    orig_dtype = x.dtype
    itemsize = jnp.dtype(orig_dtype).itemsize
    n = x.size

    # Tiny / sub-threshold inputs: fused XLA elementwise already hits HBM BW
    # and avoids the pallas_call launch + pipeline ramp.
    if n < max(min_pallas_elems, _LANES):
        return jnp.where(x > threshold, x, jnp.zeros_like(x))

    x_flat = x.reshape(-1)
    rem = n % _LANES
    if rem:
        # Ragged tail: pad by at most 127 elements, slice the output once.
        x_flat = jnp.pad(x_flat, (0, _LANES - rem))

    rows = x_flat.size // _LANES
    x2d = x_flat.reshape(rows, _LANES)

    tile_bytes, vmem_limit, num_tc = _tpu_generation_params()
    block_rows = _pick_block_rows(rows, itemsize, tile_bytes, num_tc)
    grid = (pl.cdiv(rows, block_rows),)

    out2d = pl.pallas_call(
        functools.partial(_tilu_kernel, threshold=threshold),
        out_shape=jax.ShapeDtypeStruct((rows, _LANES), orig_dtype),
        grid_spec=pl.GridSpec(
            grid=grid,
            in_specs=[pl.BlockSpec((block_rows, _LANES), lambda i: (i, 0))],
            out_specs=pl.BlockSpec((block_rows, _LANES), lambda i: (i, 0)),
        ),
        compiler_params=pltpu.CompilerParams(
            dimension_semantics=("parallel",),
            vmem_limit_bytes=vmem_limit,
        ),
        cost_estimate=pl.CostEstimate(
            flops=0, transcendentals=0, bytes_accessed=2 * n * itemsize
        ),
    )(x2d)

    out_flat = out2d.reshape(-1)
    if rem:
        out_flat = out_flat[:n]
    return out_flat.reshape(orig_shape)


if __name__ == "__main__":
    key = jax.random.PRNGKey(0)
    threshold = 0.25

    # Small NCHW-style input consistent with a conv-activation use case.
    k0, k1 = jax.random.split(key)
    x = jax.random.normal(k0, (2, 4, 16, 16), dtype=jnp.float32)

    # Force the Pallas kernel path even at this small test size.
    tilu_fn = jax.jit(lambda a: tilu_pallas(a, threshold, min_pallas_elems=0))
    out = tilu_fn(x)
    jax.block_until_ready(out)

    ref = jnp.where(x > threshold, x, jnp.zeros_like(x))
    assert out.shape == x.shape and out.dtype == x.dtype
    assert jnp.array_equal(out, ref)

    # Ragged-tail path (n % 128 != 0): pad + single output slice.
    x_rag = jax.random.normal(k1, (3, 50), dtype=jnp.float32)  # 150 elements
    out_rag = jax.jit(lambda a: tilu_pallas(a, threshold, min_pallas_elems=0))(x_rag)
    jax.block_until_ready(out_rag)
    ref_rag = jnp.where(x_rag > threshold, x_rag, jnp.zeros_like(x_rag))
    assert out_rag.shape == x_rag.shape and jnp.array_equal(out_rag, ref_rag)

    # Default small-input fallback path (no kernel launch) stays correct.
    out_small = jax.jit(lambda a: tilu_pallas(a, threshold))(x)
    assert jnp.array_equal(out_small, ref)

    print("KERNEL_OK")
</pallas_src>

<mosaic_0001>
module attributes {stable_mosaic.version = 11 : i64} {
  func.func @_tilu_kernel(%arg0: i32, %arg1: memref<16x128xf32, #tpu.memory_space<vmem>>, %arg2: memref<16x128xf32, #tpu.memory_space<vmem>>) attributes {dimension_semantics = [#tpu.dimension_semantics<parallel>], iteration_bounds = array<i64: 1>, scalar_prefetch = 0 : i64, scratch_operands = 0 : i64, tpu.core_type = #tpu.core_type<tc>, window_params = [{transform_indices = @transform_0, window_bounds = array<i64: 16, 128>}, {transform_indices = @transform_1, window_bounds = array<i64: 16, 128>}]} {
    %c0 = arith.constant 0 : index
    %c0_0 = arith.constant 0 : index
    %0 = vector.load %arg1[%c0, %c0_0] : memref<16x128xf32, #tpu.memory_space<vmem>>, vector<16x128xf32>
    %cst = arith.constant 2.500000e-01 : f32
    %1 = vector.broadcast %cst : f32 to vector<16x128xf32>
    %2 = arith.cmpf ogt, %0, %1 : vector<16x128xf32>
    %cst_1 = arith.constant 0.000000e+00 : f32
    %3 = vector.broadcast %cst_1 : f32 to vector<16x128xf32>
    %4 = arith.select %2, %0, %3 : vector<16x128xi1>, vector<16x128xf32>
    %c0_2 = arith.constant 0 : index
    %c0_3 = arith.constant 0 : index
    %5 = vector.load %arg2[%c0_2, %c0_3] : memref<16x128xf32, #tpu.memory_space<vmem>>, vector<16x128xf32>
    tpu.vector_store %arg2[%c0_2, %c0_3], %4 {strides = array<i32>} : memref<16x128xf32, #tpu.memory_space<vmem>>, vector<16x128xf32>,
    return
  }
  func.func @transform_0(%arg0: i32) -> (i32, i32) {
    %c0_i32 = arith.constant 0 : i32
    %c0_i32_0 = arith.constant 0 : i32
    return %arg0, %c0_i32 : i32, i32
  }
  func.func @transform_1(%arg0: i32) -> (i32, i32) {
    %c0_i32 = arith.constant 0 : i32
    %c0_i32_0 = arith.constant 0 : i32
    return %arg0, %c0_i32 : i32, i32
  }
}

</mosaic_0001>

<llo_original>
// kernel: _lambda_.1
$region0: #{_lambda_.1}
  #allocation0 [shape = 'u32[]', space=smem, size = 0x4, offset = 0x4, fixed_abs, tag = 'smem constant byte address 0x4 - core index']
  #allocation1 [shape = 'u32[144,128]{1,0:T(1,128)}', space=vmem, size = 0x12000, scoped, tag = 'internal scratch']
  %s0 = inlined_call_operand.vmem [shape: f32[16,128], index: 0, kind: input, shape index: {}]
  %s1 = inlined_call_operand.vmem [shape: f32[16,128], index: 1, kind: output, shape index: {}]
  %s2 = sld [smem:[#allocation0]]
  $region14: #{_lambda_.1} parent=0
    _
  %s4 = ssub.s32 1, %s2
  %s5 = scalar_select 0, %s4, %s2
  // Predicated region
  $region2: #{_lambda_.1} parent=0 // pred_check
    _
  $region3: #{_lambda_.1} parent=0 // pred_check_branch
    %7 = sbr.rel (0) target = $region5
  $region4: #{_lambda_.1} parent=0 // pred_region
    _
  $region5: #{_lambda_.1} parent=0 // pred_fallthru
    _
  %v8 = vld [vmem:[%s0] sm:$0xff]
  %v9 = vld [vmem:[%s0 + $0x8] sm:$0xff]
  %vm10 = vcmp.gt.f32.partialorder %v8, 0.25
  %vm11 = vcmp.gt.f32.partialorder %v9, 0.25
  %v12 = vsel %vm10, %v8, 0.0
  %v13 = vsel %vm11, %v9, 0.0
  %14 = vst [vmem:[%s1] sm:$0xff] %v12
  %15 = vst [vmem:[%s1 + $0x8] sm:$0xff] %v13
  // Predicated region
  $region6: #{_lambda_.1} parent=0 // pred_check
    _
  $region7: #{_lambda_.1} parent=0 // pred_check_branch
    %17 = sbr.rel (0) target = $region9
  $region8: #{_lambda_.1} parent=0 // pred_region
    _
  $region9: #{_lambda_.1} parent=0 // pred_fallthru
    _
  // Predicated region
  $region10: #{_lambda_.1} parent=0 // pred_check
    _
  $region11: #{_lambda_.1} parent=0 // pred_check_branch
    %19 = sbr.rel (0) target = $region13
  $region12: #{_lambda_.1} parent=0 // pred_region
    _
  $region13: #{_lambda_.1} parent=0 // pred_fallthru
    _

</llo_original>
